<compile_context>
chip_gen: v7x
topology: tpu7x:2x2x1
jax: 0.10.0
libtpu: 0.0.40
codegen_flags: <defaults>
</compile_context>

<pallas_src>
import functools

import jax
import jax.numpy as jnp
from jax.experimental import pallas as pl
from jax.experimental.pallas import tpu as pltpu


def _round_up(a: int, b: int) -> int:
    return (a + b - 1) // b * b


def _policy_kernel(x_ref, w1p_ref, w2p_ref, *refs,
                   n_in: int, hidden: int, n_out: int, training: bool):
    # x:   (TB, n_in)            f32
    # w1p: (n_in + 1, hidden)    rows 0..n_in-1 = W1 (pre-transposed), row n_in = b1
    # w2p: (hidden + 1, n_out)   rows 0..hidden-1 = W2 (pre-transposed), row hidden = b2
    # mask (training only): (TB, hidden), already scaled by 1/(1-p)
    # out: (TB, n_out)
    if training:
        mask_ref, out_ref = refs
    else:
        (out_ref,) = refs

    x = x_ref[...]

    # ---- affine1: K = n_in is tiny, do unrolled VPU broadcast-FMAs (skip MXU).
    h = w1p_ref[n_in:n_in + 1, :]                      # bias row (1, hidden)
    for k in range(n_in):                              # statically unrolled
        h = h + x[:, k:k + 1] * w1p_ref[k:k + 1, :]    # (TB,1)*(1,H) -> (TB,H)

    # ---- dropout (PyTorch order: affine1 -> dropout -> relu).
    if training:
        h = h * mask_ref[...]

    # ---- relu
    h = jnp.maximum(h, 0.0)

    # ---- affine2: real matmul on the MXU.
    s = jnp.dot(h, w2p_ref[0:hidden, :], preferred_element_type=jnp.float32)
    s = s + w2p_ref[hidden:hidden + 1, :]

    # ---- softmax over dim=1
    if n_out == 2:
        # 2-class closed form: avoids padded 128-lane cross-lane reduces.
        s0 = s[:, 0:1]
        s1 = s[:, 1:2]
        m = jnp.maximum(s0, s1)
        e0 = jnp.exp(s0 - m)
        e1 = jnp.exp(s1 - m)
        inv = 1.0 / (e0 + e1)
        probs = jnp.concatenate([e0 * inv, e1 * inv], axis=1)
    else:
        m = jnp.max(s, axis=1, keepdims=True)
        e = jnp.exp(s - m)
        probs = e / jnp.sum(e, axis=1, keepdims=True)

    out_ref[...] = probs.astype(out_ref.dtype)


def policy_forward(x, params, *, training=False, drop_p=0.6, dropout_key=None):
    """Policy forward pass.  x: (B, n_inputs) float32. Returns (B, n_outputs) probs."""
    w1, b1, w2, b2 = params
    B, n_in = x.shape
    hidden = w1.shape[1]
    n_out = w2.shape[1]

    # Pack biases into the weight slabs (fewer operands -> fewer per-call DMAs).
    w1p = jnp.concatenate([w1, b1.reshape(1, hidden)], axis=0).astype(jnp.float32)
    w2p = jnp.concatenate([w2, b2.reshape(1, n_out)], axis=0).astype(jnp.float32)

    # Batch tiling: f32 sublane tile is 8 rows, so pad B up; big batches stream
    # in 512-row tiles (weights are grid-invariant, only activations move).
    TB = min(512, _round_up(B, 8))
    Bp = _round_up(B, TB)
    grid = (Bp // TB,)

    x_pad = jnp.pad(x.astype(jnp.float32), ((0, Bp - B), (0, 0)))

    kernel = functools.partial(_policy_kernel, n_in=n_in, hidden=hidden,
                               n_out=n_out, training=training)

    in_specs = [
        pl.BlockSpec((TB, n_in), lambda i: (i, 0)),            # x tiles stream
        pl.BlockSpec((n_in + 1, hidden), lambda i: (0, 0)),    # w1+b1 resident
        pl.BlockSpec((hidden + 1, n_out), lambda i: (0, 0)),   # w2+b2 resident
    ]
    inputs = [x_pad, w1p, w2p]

    if training:
        if dropout_key is None:
            dropout_key = jax.random.PRNGKey(0)
        keep = jax.random.bernoulli(dropout_key, 1.0 - drop_p, (Bp, hidden))
        mask = keep.astype(jnp.float32) * (1.0 / (1.0 - drop_p))
        in_specs.append(pl.BlockSpec((TB, hidden), lambda i: (i, 0)))
        inputs.append(mask)

    out = pl.pallas_call(
        kernel,
        out_shape=jax.ShapeDtypeStruct((Bp, n_out), jnp.float32),
        grid=grid,
        in_specs=in_specs,
        out_specs=pl.BlockSpec((TB, n_out), lambda i: (i, 0)),
        compiler_params=pltpu.CompilerParams(dimension_semantics=("parallel",)),
    )(*inputs)
    return out[:B]


def init_params(key, n_inputs=4, hidden=128, n_outputs=2):
    """Init matching PyTorch nn.Linear's U(-1/sqrt(fan_in), +1/sqrt(fan_in)).
    Weights stored pre-transposed as (in_features, out_features)."""
    k1, k2, k3, k4 = jax.random.split(key, 4)
    bound1 = 1.0 / float(jnp.sqrt(jnp.float32(n_inputs)))
    w1 = jax.random.uniform(k1, (n_inputs, hidden), jnp.float32, -bound1, bound1)
    b1 = jax.random.uniform(k2, (1, hidden), jnp.float32, -bound1, bound1)
    bound2 = 1.0 / float(jnp.sqrt(jnp.float32(hidden)))
    w2 = jax.random.uniform(k3, (hidden, n_outputs), jnp.float32, -bound2, bound2)
    b2 = jax.random.uniform(k4, (1, n_outputs), jnp.float32, -bound2, bound2)
    return w1, b1, w2, b2


def _reference_forward(x, params):
    """Pure-JAX reference (eval mode)."""
    w1, b1, w2, b2 = params
    h = jnp.maximum(x @ w1 + b1, 0.0)
    s = h @ w2 + b2
    return jax.nn.softmax(s, axis=1)


if __name__ == "__main__":
    key = jax.random.PRNGKey(0)
    k_param, k_x, k_xb, k_drop = jax.random.split(key, 4)

    # CartPole-v1: observation dim = 4, action dim = 2
    n_inputs, hidden, n_outputs, batch = 4, 128, 2, 2
    params = init_params(k_param, n_inputs, hidden, n_outputs)
    x = jax.random.normal(k_x, (batch, n_inputs), dtype=jnp.float32)

    # Eval-mode forward (dropout == identity): must match pure-JAX reference.
    probs = jax.block_until_ready(policy_forward(x, params, training=False))
    ref = _reference_forward(x, params)
    assert probs.shape == (batch, n_outputs)
    assert jnp.allclose(jnp.sum(probs, axis=1), 1.0, atol=1e-5)
    assert jnp.allclose(probs, ref, atol=1e-5)

    # Batched rollout-style call (non-multiple-of-8 batch exercises the pad path).
    xb = jax.random.normal(k_xb, (10, n_inputs), dtype=jnp.float32)
    probs_b = jax.block_until_ready(policy_forward(xb, params, training=False))
    assert probs_b.shape == (10, n_outputs)
    assert jnp.allclose(probs_b, _reference_forward(xb, params), atol=1e-5)

    # Training-mode forward (dropout active via host-side jax.random mask).
    probs_train = jax.block_until_ready(
        policy_forward(x, params, training=True, dropout_key=k_drop))
    assert probs_train.shape == (batch, n_outputs)
    assert jnp.allclose(jnp.sum(probs_train, axis=1), 1.0, atol=1e-5)

    print("KERNEL_OK")
</pallas_src>

<mosaic_0001>
module attributes {stable_mosaic.version = 11 : i64} {
  func.func @_policy_kernel(%arg0: i32, %arg1: memref<8x4xf32, #tpu.memory_space<vmem>>, %arg2: memref<5x128xf32, #tpu.memory_space<vmem>>, %arg3: memref<129x2xf32, #tpu.memory_space<vmem>>, %arg4: memref<8x2xf32, #tpu.memory_space<vmem>>) attributes {dimension_semantics = [#tpu.dimension_semantics<parallel>], iteration_bounds = array<i64: 1>, scalar_prefetch = 0 : i64, scratch_operands = 0 : i64, tpu.core_type = #tpu.core_type<tc>, window_params = [{transform_indices = @transform_0, window_bounds = array<i64: 8, 4>}, {pipeline_mode = #tpu.pipeline_mode<synchronous>, transform_indices = @transform_1, window_bounds = array<i64: 5, 128>}, {pipeline_mode = #tpu.pipeline_mode<synchronous>, transform_indices = @transform_2, window_bounds = array<i64: 129, 2>}, {transform_indices = @transform_3, window_bounds = array<i64: 8, 2>}]} {
    %c0 = arith.constant 0 : index
    %c0_0 = arith.constant 0 : index
    %0 = vector.load %arg1[%c0, %c0_0] : memref<8x4xf32, #tpu.memory_space<vmem>>, vector<8x4xf32>
    %c4 = arith.constant 4 : index
    %c0_1 = arith.constant 0 : index
    %1 = vector.load %arg2[%c4, %c0_1] : memref<5x128xf32, #tpu.memory_space<vmem>>, vector<1x128xf32>
    %2 = vector.extract_strided_slice %0 {offsets = [0, 0], sizes = [8, 1], strides = [1, 1]} : vector<8x4xf32> to vector<8x1xf32>
    %c0_2 = arith.constant 0 : index
    %c0_3 = arith.constant 0 : index
    %3 = vector.load %arg2[%c0_2, %c0_3] : memref<5x128xf32, #tpu.memory_space<vmem>>, vector<1x128xf32>
    %4 = vector.broadcast %2 : vector<8x1xf32> to vector<8x128xf32>
    %5 = vector.broadcast %3 : vector<1x128xf32> to vector<8x128xf32>
    %6 = arith.mulf %4, %5 : vector<8x128xf32>
    %7 = vector.broadcast %1 : vector<1x128xf32> to vector<8x128xf32>
    %8 = arith.addf %7, %6 : vector<8x128xf32>
    %9 = vector.extract_strided_slice %0 {offsets = [0, 1], sizes = [8, 1], strides = [1, 1]} : vector<8x4xf32> to vector<8x1xf32>
    %c1 = arith.constant 1 : index
    %c0_4 = arith.constant 0 : index
    %10 = vector.load %arg2[%c1, %c0_4] : memref<5x128xf32, #tpu.memory_space<vmem>>, vector<1x128xf32>
    %11 = vector.broadcast %9 : vector<8x1xf32> to vector<8x128xf32>
    %12 = vector.broadcast %10 : vector<1x128xf32> to vector<8x128xf32>
    %13 = arith.mulf %11, %12 : vector<8x128xf32>
    %14 = arith.addf %8, %13 : vector<8x128xf32>
    %15 = vector.extract_strided_slice %0 {offsets = [0, 2], sizes = [8, 1], strides = [1, 1]} : vector<8x4xf32> to vector<8x1xf32>
    %c2 = arith.constant 2 : index
    %c0_5 = arith.constant 0 : index
    %16 = vector.load %arg2[%c2, %c0_5] : memref<5x128xf32, #tpu.memory_space<vmem>>, vector<1x128xf32>
    %17 = vector.broadcast %15 : vector<8x1xf32> to vector<8x128xf32>
    %18 = vector.broadcast %16 : vector<1x128xf32> to vector<8x128xf32>
    %19 = arith.mulf %17, %18 : vector<8x128xf32>
    %20 = arith.addf %14, %19 : vector<8x128xf32>
    %21 = vector.extract_strided_slice %0 {offsets = [0, 3], sizes = [8, 1], strides = [1, 1]} : vector<8x4xf32> to vector<8x1xf32>
    %c3 = arith.constant 3 : index
    %c0_6 = arith.constant 0 : index
    %22 = vector.load %arg2[%c3, %c0_6] : memref<5x128xf32, #tpu.memory_space<vmem>>, vector<1x128xf32>
    %23 = vector.broadcast %21 : vector<8x1xf32> to vector<8x128xf32>
    %24 = vector.broadcast %22 : vector<1x128xf32> to vector<8x128xf32>
    %25 = arith.mulf %23, %24 : vector<8x128xf32>
    %26 = arith.addf %20, %25 : vector<8x128xf32>
    %cst = arith.constant 0.000000e+00 : f32
    %27 = vector.broadcast %cst : f32 to vector<8x128xf32>
    %28 = arith.maximumf %26, %27 : vector<8x128xf32>
    %c0_7 = arith.constant 0 : index
    %c0_8 = arith.constant 0 : index
    %29 = vector.load %arg3[%c0_7, %c0_8] : memref<129x2xf32, #tpu.memory_space<vmem>>, vector<128x2xf32>
    %cst_9 = arith.constant dense<0.000000e+00> : vector<8x2xf32>
    %30 = tpu.matmul %28, %29, %cst_9 {dimension_numbers = #tpu.dot_dimension_numbers<[1], [0], [0], [1], [0, 0, 1, 1], [], []>} : vector<8x128xf32>, vector<128x2xf32>, vector<8x2xf32> -> vector<8x2xf32>
    %c128 = arith.constant 128 : index
    %c0_10 = arith.constant 0 : index
    %31 = vector.load %arg3[%c128, %c0_10] : memref<129x2xf32, #tpu.memory_space<vmem>>, vector<1x2xf32>
    %32 = vector.broadcast %31 : vector<1x2xf32> to vector<8x2xf32>
    %33 = arith.addf %30, %32 : vector<8x2xf32>
    %34 = vector.extract_strided_slice %33 {offsets = [0, 0], sizes = [8, 1], strides = [1, 1]} : vector<8x2xf32> to vector<8x1xf32>
    %35 = vector.extract_strided_slice %33 {offsets = [0, 1], sizes = [8, 1], strides = [1, 1]} : vector<8x2xf32> to vector<8x1xf32>
    %36 = arith.maximumf %34, %35 : vector<8x1xf32>
    %37 = arith.subf %34, %36 : vector<8x1xf32>
    %38 = math.exp %37 : vector<8x1xf32>
    %39 = arith.subf %35, %36 : vector<8x1xf32>
    %40 = math.exp %39 : vector<8x1xf32>
    %41 = arith.addf %38, %40 : vector<8x1xf32>
    %cst_11 = arith.constant 1.000000e+00 : f32
    %42 = vector.broadcast %cst_11 : f32 to vector<8x1xf32>
    %43 = arith.divf %42, %41 : vector<8x1xf32>
    %44 = arith.mulf %38, %43 : vector<8x1xf32>
    %45 = arith.mulf %40, %43 : vector<8x1xf32>
    %46 = tpu.concatenate %44, %45 in 1 : vector<8x1xf32>, vector<8x1xf32> -> vector<8x2xf32>
    %c0_12 = arith.constant 0 : index
    %c0_13 = arith.constant 0 : index
    %47 = vector.load %arg4[%c0_12, %c0_13] : memref<8x2xf32, #tpu.memory_space<vmem>>, vector<8x2xf32>
    tpu.vector_store %arg4[%c0_12, %c0_13], %46 {strides = array<i32>} : memref<8x2xf32, #tpu.memory_space<vmem>>, vector<8x2xf32>,
    return
  }
  func.func @transform_0(%arg0: i32) -> (i32, i32) {
    %c0_i32 = arith.constant 0 : i32
    %c0_i32_0 = arith.constant 0 : i32
    return %arg0, %c0_i32 : i32, i32
  }
  func.func @transform_1(%arg0: i32) -> (i32, i32) {
    %c0_i32 = arith.constant 0 : i32
    %c0_i32_0 = arith.constant 0 : i32
    %c0_i32_1 = arith.constant 0 : i32
    return %c0_i32, %c0_i32_0 : i32, i32
  }
  func.func @transform_2(%arg0: i32) -> (i32, i32) {
    %c0_i32 = arith.constant 0 : i32
    %c0_i32_0 = arith.constant 0 : i32
    %c0_i32_1 = arith.constant 0 : i32
    return %c0_i32, %c0_i32_0 : i32, i32
  }
  func.func @transform_3(%arg0: i32) -> (i32, i32) {
    %c0_i32 = arith.constant 0 : i32
    %c0_i32_0 = arith.constant 0 : i32
    return %arg0, %c0_i32 : i32, i32
  }
}

</mosaic_0001>

<llo_original>
// kernel: tpu_custom_call.1
$region0: #{tpu_custom_call.1}
  #allocation0 [shape = 'u32[]', space=smem, size = 0x4, offset = 0x4, fixed_abs, tag = 'smem constant byte address 0x4 - core index']
  #allocation1 [shape = 'u32[144,128]{1,0:T(1,128)}', space=vmem, size = 0x12000, scoped, tag = 'internal scratch']
  %s0 = inlined_call_operand.vmem [shape: f32[8,4], index: 0, kind: input, shape index: {}]
  %s1 = inlined_call_operand.vmem [shape: f32[5,128], index: 1, kind: input, shape index: {}]
  %s2 = inlined_call_operand.vmem [shape: f32[129,2], index: 2, kind: input, shape index: {}]
  %s3 = inlined_call_operand.vmem [shape: f32[8,2], index: 3, kind: output, shape index: {}]
  %s4 = sld [smem:[#allocation0]]
  $region22: #{tpu_custom_call.1} parent=0
    _
  %s6 = ssub.s32 1, %s4
  %s7 = scalar_select 0, %s6, %s4
  // Predicated region
  $region2: #{tpu_custom_call.1} parent=0 // pred_check
    _
  $region3: #{tpu_custom_call.1} parent=0 // pred_check_branch
    %9 = sbr.rel (0) target = $region5
  $region4: #{tpu_custom_call.1} parent=0 // pred_region
    _
  $region5: #{tpu_custom_call.1} parent=0 // pred_fallthru
    _
  // Predicated region
  $region6: #{tpu_custom_call.1} parent=0 // pred_check
    _
  $region7: #{tpu_custom_call.1} parent=0 // pred_check_branch
    %11 = sbr.rel (0) target = $region9
  $region8: #{tpu_custom_call.1} parent=0 // pred_region
    _
  $region9: #{tpu_custom_call.1} parent=0 // pred_fallthru
    _
  // Predicated region
  $region10: #{tpu_custom_call.1} parent=0 // pred_check
    _
  $region11: #{tpu_custom_call.1} parent=0 // pred_check_branch
    %13 = sbr.rel (0) target = $region13
  $region12: #{tpu_custom_call.1} parent=0 // pred_region
    _
  $region13: #{tpu_custom_call.1} parent=0 // pred_fallthru
    _
  %v14 = vld [vmem:[%s0] sm:$0xff]
  %v15 = vld [vmem:[%s1 + $0x4] sm:$0x1]
  %v16 = vld [vmem:[%s1] sm:$0x1]
  %18 = vset.pattern.permute.xlu0 0
  %19 = vperm.xlu0 %18, %v14
  %v20 = vpop.permute.xlu0 %19
  %v22 = vlaneseq
  %v23 = vshrl.u32 %v22, 7
  %v24 = vsub.s32 0, %v23
  %v25 = vrot.slane %v16, %v24
  %v26 = vmul.f32 %v20, %v25
  %v27 = vlaneseq
  %v28 = vshrl.u32 %v27, 7
  %v29 = vsub.s32 0, %v28
  %v30 = vrot.slane %v15, %v29
  %v31 = vadd.f32 %v30, %v26
  %v32 = vld [vmem:[%s1 + $0x1] sm:$0x1]
  %33 = vset.pattern.permute.xlu0 1
  %34 = vperm.xlu0 %33, %v14
  %v35 = vpop.permute.xlu0 %34
  %v37 = vlaneseq
  %v38 = vshrl.u32 %v37, 7
  %v39 = vsub.s32 0, %v38
  %v40 = vrot.slane %v32, %v39
  %v41 = vmul.f32 %v35, %v40
  %v42 = vadd.f32 %v31, %v41
  %v43 = vld [vmem:[%s1 + $0x2] sm:$0x1]
  %44 = vset.pattern.permute.xlu0 2
  %45 = vperm.xlu0 %44, %v14
  %v46 = vpop.permute.xlu0 %45
  %v48 = vlaneseq
  %v49 = vshrl.u32 %v48, 7
  %v50 = vsub.s32 0, %v49
  %v51 = vrot.slane %v43, %v50
  %v52 = vmul.f32 %v46, %v51
  %v53 = vadd.f32 %v42, %v52
  %v54 = vld [vmem:[%s1 + $0x3] sm:$0x1]
  %55 = vset.pattern.permute.xlu0 3
  %56 = vperm.xlu0 %55, %v14
  %v57 = vpop.permute.xlu0 %56
  %v59 = vlaneseq
  %v60 = vshrl.u32 %v59, 7
  %v61 = vsub.s32 0, %v60
  %v62 = vrot.slane %v54, %v61
  %v63 = vmul.f32 %v57, %v62
  %v64 = vadd.f32 %v53, %v63
  %v65 = vmax.f32 %v64, 0.0
  %v66 = vld [vmem:[%s2] sm:$0xff]
  %v67 = vld [vmem:[%s2 + $0x8] sm:$0xff]
  %v68 = vld [vmem:[%s2 + $0x10] sm:$0xff]
  %v69 = vld [vmem:[%s2 + $0x18] sm:$0xff]
  %v70 = vld [vmem:[%s2 + $0x20] sm:$0xff]
  %v71 = vld [vmem:[%s2 + $0x28] sm:$0xff]
  %v72 = vld [vmem:[%s2 + $0x30] sm:$0xff]
  %v73 = vld [vmem:[%s2 + $0x38] sm:$0xff]
  %v74 = vld [vmem:[%s2 + $0x40] sm:$0xff]
  %v75 = vld [vmem:[%s2 + $0x48] sm:$0xff]
  %v76 = vld [vmem:[%s2 + $0x50] sm:$0xff]
  %v77 = vld [vmem:[%s2 + $0x58] sm:$0xff]
  %v78 = vld [vmem:[%s2 + $0x60] sm:$0xff]
  %v79 = vld [vmem:[%s2 + $0x68] sm:$0xff]
  %v80 = vld [vmem:[%s2 + $0x70] sm:$0xff]
  %v81 = vld [vmem:[%s2 + $0x78] sm:$0xff]
  %v82 = vld [vmem:[%s2 + $0x80] sm:$0x1]
  %v83 = vlaneseq
  %v84 = vshrl.u32 %v83, 7
  %v85 = vsub.s32 0, %v84
  %v86 = vrot.slane %v82, %v85
  %87 = vmatprep.subr.mxu0 0.0
  %88 = vmatpush1.msra.mxu0 %v66
  %89 = vmatprep.subr.mxu0 0.0
  %90 = vmatpush1.msra.mxu0 %v67
  %91 = vmatprep.subr.mxu0 0.0
  %92 = vmatpush1.msra.mxu0 %v68
  %93 = vmatprep.subr.mxu0 0.0
  %94 = vmatpush1.msra.mxu0 %v69
  %95 = vmatprep.subr.mxu0 0.0
  %96 = vmatpush1.msra.mxu0 %v70
  %97 = vmatprep.subr.mxu0 0.0
  %98 = vmatpush1.msra.mxu0 %v71
  %99 = vmatprep.subr.mxu0 0.0
  %100 = vmatpush1.msra.mxu0 %v72
  %101 = vmatprep.subr.mxu0 0.0
  %102 = vmatpush1.msra.mxu0 %v73
  %103 = vmatprep.subr.mxu0 0.0
  %104 = vmatpush1.msra.mxu0 %v74
  %105 = vmatprep.subr.mxu0 0.0
  %106 = vmatpush1.msra.mxu0 %v75
  %107 = vmatprep.subr.mxu0 0.0
  %108 = vmatpush1.msra.mxu0 %v76
  %109 = vmatprep.subr.mxu0 0.0
  %110 = vmatpush1.msra.mxu0 %v77
  %111 = vmatprep.subr.mxu0 0.0
  %112 = vmatpush1.msra.mxu0 %v78
  %113 = vmatprep.subr.mxu0 0.0
  %114 = vmatpush1.msra.mxu0 %v79
  %115 = vmatprep.subr.mxu0 0.0
  %116 = vmatpush1.msra.mxu0 %v80
  %117 = vmatprep.subr.mxu0 0.0
  %118 = vmatpush1.msra.mxu0 %v81
  %119 = vmatprep.subr.mxu0 0.0
  %120 = vmatpush1.msra.mxu0 0.0
  %121 = vmatprep.subr.mxu0 0.0
  %122 = vmatpush1.msra.mxu0 0.0
  %123 = vmatprep.subr.mxu0 0.0
  %124 = vmatpush1.msra.mxu0 0.0
  %125 = vmatprep.subr.mxu0 0.0
  %126 = vmatpush1.msra.mxu0 0.0
  %127 = vmatprep.subr.mxu0 0.0
  %128 = vmatpush1.msra.mxu0 0.0
  %129 = vmatprep.subr.mxu0 0.0
  %130 = vmatpush1.msra.mxu0 0.0
  %131 = vmatprep.subr.mxu0 0.0
  %132 = vmatpush1.msra.mxu0 0.0
  %133 = vmatprep.subr.mxu0 0.0
  %134 = vmatpush1.msra.mxu0 0.0
  %135 = vmatprep.subr.mxu0 0.0
  %136 = vmatpush1.msra.mxu0 0.0
  %137 = vmatprep.subr.mxu0 0.0
  %138 = vmatpush1.msra.mxu0 0.0
  %139 = vmatprep.subr.mxu0 0.0
  %140 = vmatpush1.msra.mxu0 0.0
  %141 = vmatprep.subr.mxu0 0.0
  %142 = vmatpush1.msra.mxu0 0.0
  %143 = vmatprep.subr.mxu0 0.0
  %144 = vmatpush1.msra.mxu0 0.0
  %145 = vmatprep.subr.mxu0 0.0
  %146 = vmatpush1.msra.mxu0 0.0
  %147 = vmatprep.subr.mxu0 0.0
  %148 = vmatpush1.msra.mxu0 0.0
  %149 = vmatprep.subr.mxu0 0.0
  %150 = vmatpush1.msra.mxu0 0.0
  %151 = vmatprep.mubr.f32.mxu0 0.0
  %152 = vmatmul.mubr.f32.gmra.mrb[0].mxu0 %v65
  %v153 = vpop.f32.mrb[0].mxu0
  %v154 = vadd.f32 %v86, %v153
  %v155 = vpop.f32.mrb[0].mxu0
  %156 = vdwg.mxu0
  %158 = vrot.lane.b32.xlu0 %v154, 127
  %v159 = vpop.permute.xlu0 %158
  %v161 = vmax.f32 %v154, %v159
  %v162 = vsub.f32 %v154, %v161
  %v163 = vmul.f32 %v162, 1.442695
  %v164 = vpow.pop %v163
  %166 = vrot.lane.b32.xlu0 %v161, 1
  %v167 = vpop.permute.xlu0 %166
  %v169 = vsub.f32 %v154, %v167
  %v170 = vmul.f32 %v169, 1.442695
  %v171 = vpow.pop %v170
  %173 = vrot.lane.b32.xlu0 %v171, 127
  %v174 = vpop.permute.xlu0 %173
  %v176 = vadd.f32 %v164, %v174
  %v177 = vrcp.pop %v176
  %v178 = vmul.f32 1.0, %v177
  %v179 = vmul.f32 %v164, %v178
  %181 = vrot.lane.b32.xlu0 %v178, 1
  %v182 = vpop.permute.xlu0 %181
  %v184 = vmul.f32 %v171, %v182
  %vm185 = vcmask 7168
  %v186 = vsel %vm185, %v179, %v184
  %vm187 = vcmask 15360
  %188 = vst.msk [vmem:[%s3] sm:$0xff] %vm187, %v186
  // Predicated region
  $region14: #{tpu_custom_call.1} parent=0 // pred_check
    _
  $region15: #{tpu_custom_call.1} parent=0 // pred_check_branch
    %190 = sbr.rel (0) target = $region17
  $region16: #{tpu_custom_call.1} parent=0 // pred_region
    _
  $region17: #{tpu_custom_call.1} parent=0 // pred_fallthru
    _
  // Predicated region
  $region18: #{tpu_custom_call.1} parent=0 // pred_check
    _
  $region19: #{tpu_custom_call.1} parent=0 // pred_check_branch
    %192 = sbr.rel (0) target = $region21
  $region20: #{tpu_custom_call.1} parent=0 // pred_region
    _
  $region21: #{tpu_custom_call.1} parent=0 // pred_fallthru
    _

</llo_original>
